<compile_context>
chip_gen: v7x
topology: tpu7x:2x2x1
jax: 0.10.0
libtpu: 0.0.40
codegen_flags: <defaults>
</compile_context>

<pallas_src>
import functools

import jax
import jax.numpy as jnp
from jax.experimental import pallas as pl
from jax.experimental.pallas import tpu as pltpu


_HIDDEN = 24  # width of the first Linear, fixed by the module


def _attn_kernel(x_ref, w1_ref, b1_ref, w2_ref, out_ref, *, valid_t):
    # x_ref:   (Bb, Tp, H)  compute-dtype (bf16) block of (padded) batch rows
    # w1_ref:  (H, 24)      compute-dtype first linear weight (H x 24)
    # b1_ref:  (1, 24)      f32 first linear bias
    # w2_ref:  (1, 24)      f32 second linear weight as a row vector
    # out_ref: (1, Bb, Tp)  lane-dense attention weights (f32)
    Bb, Tp, H = x_ref.shape

    # Tp is padded to the sublane tile of x's dtype, so this merge is free.
    x2d = x_ref[...].reshape(Bb * Tp, H)

    # Linear(H, 24) + ReLU: MXU matmul with f32 accumulation, VPU max.
    h = jnp.dot(x2d, w1_ref[...], preferred_element_type=jnp.float32)
    h = jnp.maximum(h + b1_ref[...], 0.0)                        # (Bb*Tp, 24) f32

    # Linear(24, 1) as a VPU multiply + lane reduce.  The second-layer bias b2
    # is intentionally omitted: softmax over T is shift-invariant, so adding
    # the same scalar to every timestep cancels exactly.
    s = jnp.sum(h.reshape(Bb, Tp, _HIDDEN) * w2_ref[...], axis=-1)  # (Bb, Tp)

    # Mask out sequence padding (zero rows appended by the wrapper).
    if valid_t < Tp:
        t_idx = jax.lax.broadcasted_iota(jnp.int32, (Bb, Tp), 1)
        s = jnp.where(t_idx < valid_t, s, -1e30)

    # Softmax over the sequence axis (lane axis -> full vregs feed the XLU),
    # with the divide replaced by an EUP approximate reciprocal.
    m = jnp.max(s, axis=-1, keepdims=True)                       # (Bb, 1)
    e = jnp.exp(s - m)                                           # (Bb, Tp)
    denom = jnp.sum(e, axis=-1, keepdims=True)                   # (Bb, 1)
    out_ref[0] = (e * pl.reciprocal(denom, approx=True)).astype(out_ref.dtype)


def _round_up(x, m):
    return -(-x // m) * m


def _tpu_config():
    """Returns (per-core VMEM capacity in bytes, whether the chip has >1 TC)."""
    vmem_cap = 64 << 20          # conservative default (v7x per-TC VMEM)
    multi_tc = False
    try:
        info = pltpu.get_tpu_info()
        vmem_cap = int(getattr(info, "vmem_capacity_bytes", vmem_cap))
    except Exception:
        pass
    try:
        kind = jax.devices()[0].device_kind.lower()
        multi_tc = "v7" in kind   # v7x: 2 TensorCores share the parallel grid
    except Exception:
        pass
    return vmem_cap, multi_tc


def _choose_grid(B, T_pad, H, x_itemsize, vmem_limit_bytes, prefer_split):
    """Pick (block_batch, num_blocks) from the *padded* VMEM footprint.

    Per padded batch row we account for: the double-buffered, lane-padded
    (H -> multiple of 128) input block, the f32 (rows, 24)->(rows, 128-lane)
    matmul intermediates, and the double-buffered lane-padded output block.
    Half the VMEM limit is kept as headroom for weights / compiler scratch.
    """
    h_pad = _round_up(H, 128)
    in_row = 2 * T_pad * h_pad * x_itemsize            # double-buffered input
    mid_row = 2 * T_pad * 128 * 4                      # f32 (., 24) intermediates
    out_row = 2 * _round_up(T_pad, 128) * 4            # double-buffered output
    row_bytes = in_row + mid_row + out_row
    budget = vmem_limit_bytes // 2
    bb_max = max(1, budget // row_bytes)
    # TODO(synk): if a single (1, T, H) row ever exceeds the budget, add a
    # secondary tile over T with carried online-softmax (m, l) state.
    blocks = -(-B // bb_max)
    if prefer_split and B >= 2:
        # v7x only: at least 2 grid steps, and an even number of steps so both
        # TensorCores run the same number of iterations.
        blocks = max(2, _round_up(blocks, 2))
    blocks = max(1, blocks)
    bb = -(-B // blocks)
    return bb, blocks


def attn_forward(encoder_outputs, w1, b1, w2, b2=None, *,
                 compute_dtype=jnp.bfloat16):
    """encoder_outputs: (B, T, H).  Returns (B, T, 1) float32.

    `b2` is accepted for API parity with the PyTorch module but is not used:
    the softmax output is mathematically independent of it.

    Inputs and w1 are cast to `compute_dtype` (bf16 by default) before the
    kernel; in a real pipeline the upstream BLSTM should emit bf16 directly so
    the cast fuses away instead of being a separate HBM pass.
    """
    B, T, H = encoder_outputs.shape
    assert w1.shape == (H, _HIDDEN) and b1.shape == (1, _HIDDEN)
    assert w2.shape == (_HIDDEN, 1)

    x = encoder_outputs.astype(compute_dtype)
    w1c = w1.astype(compute_dtype)
    b1f = b1.astype(jnp.float32)
    w2_row = w2.reshape(1, _HIDDEN).astype(jnp.float32)  # column -> row vector

    vmem_cap, multi_tc = _tpu_config()
    vmem_limit = int((vmem_cap * 3) // 4)   # ~96 MiB on v5e/v6e, ~48 MiB on v7x

    # Pad T to the sublane tile of the compute dtype (16 for bf16, 8 for f32)
    # so the in-kernel row merge is layout-free; padded timesteps are masked.
    itemsize = jnp.dtype(compute_dtype).itemsize
    sub = 8 * 4 // itemsize
    Tp = _round_up(T, sub)

    Bb, G = _choose_grid(B, Tp, H, itemsize, vmem_limit, multi_tc)
    B_pad = Bb * G

    if Tp != T or B_pad != B:
        x = jnp.pad(x, ((0, B_pad - B), (0, Tp - T), (0, 0)))

    kernel = functools.partial(_attn_kernel, valid_t=T)

    out = pl.pallas_call(
        kernel,
        out_shape=jax.ShapeDtypeStruct((G, Bb, Tp), jnp.float32),
        grid_spec=pltpu.PrefetchScalarGridSpec(
            num_scalar_prefetch=0,
            grid=(G,),
            in_specs=[
                pl.BlockSpec((Bb, Tp, H), lambda g: (g, 0, 0)),
                pl.BlockSpec((H, _HIDDEN), lambda g: (0, 0)),
                pl.BlockSpec((1, _HIDDEN), lambda g: (0, 0)),
                pl.BlockSpec((1, _HIDDEN), lambda g: (0, 0)),
            ],
            out_specs=pl.BlockSpec((1, Bb, Tp), lambda g: (g, 0, 0)),
        ),
        compiler_params=pltpu.CompilerParams(
            dimension_semantics=("parallel",),
            vmem_limit_bytes=vmem_limit,
        ),
    )(x, w1c, b1f, w2_row)

    # Free layout plumbing back to the PyTorch (B, T, 1) convention.
    return out.reshape(B_pad, Tp)[:B, :T][..., None]


def attn_reference(encoder_outputs, w1, b1, w2, b2):
    """Plain-JAX f32 reference identical to the PyTorch forward."""
    B, T, H = encoder_outputs.shape
    x = encoder_outputs.reshape(-1, H)                      # (B*T, H)
    h = jnp.maximum(x @ w1 + b1, 0.0)                       # (B*T, 24)
    s = (h @ w2 + b2).reshape(B, T)                         # (B, T)
    return jax.nn.softmax(s, axis=1)[..., None]             # (B, T, 1)


if __name__ == "__main__":
    # Small shapes consistent with the module: batch=2, seq=8, h_dim=32.
    B, T, H = 2, 8, 32

    key = jax.random.PRNGKey(0)
    k_x, k_w1, k_b1, k_w2, k_b2 = jax.random.split(key, 5)

    encoder_outputs = jax.random.normal(k_x, (B, T, H), dtype=jnp.float32)

    # Deterministic parameter init (PyTorch-Linear-style uniform bounds).
    bound1 = 1.0 / jnp.sqrt(jnp.float32(H))
    w1 = jax.random.uniform(k_w1, (H, 24), jnp.float32, -bound1, bound1)
    b1 = jax.random.uniform(k_b1, (1, 24), jnp.float32, -bound1, bound1)
    bound2 = 1.0 / jnp.sqrt(jnp.float32(24))
    w2 = jax.random.uniform(k_w2, (24, 1), jnp.float32, -bound2, bound2)
    b2 = jax.random.uniform(k_b2, (1, 1), jnp.float32, -bound2, bound2)

    out = attn_forward(encoder_outputs, w1, b1, w2, b2)
    out = jax.block_until_ready(out)

    ref = attn_reference(encoder_outputs, w1, b1, w2, b2)
    assert out.shape == (B, T, 1)
    # bf16 inputs + EUP approx reciprocal -> slightly looser tolerance vs the
    # f32 reference (observed error is ~1e-3 at these magnitudes).
    assert jnp.allclose(out, ref, atol=5e-3, rtol=5e-3), (
        f"max abs diff = {jnp.max(jnp.abs(out - ref))}"
    )
    # rows sum to 1 (softmax sanity check)
    assert jnp.allclose(jnp.sum(out[:, :, 0], axis=1), 1.0, atol=5e-3)

    print("KERNEL_OK")
</pallas_src>

<mosaic_0001>
module attributes {stable_mosaic.version = 11 : i64} {
  func.func @_attn_kernel(%arg0: i32, %arg1: memref<2x16x32xbf16, #tpu.memory_space<vmem>>, %arg2: memref<32x24xbf16, #tpu.memory_space<vmem>>, %arg3: memref<1x24xf32, #tpu.memory_space<vmem>>, %arg4: memref<1x24xf32, #tpu.memory_space<vmem>>, %arg5: memref<1x2x16xf32, #tpu.memory_space<vmem>>) attributes {dimension_semantics = [#tpu.dimension_semantics<parallel>], iteration_bounds = array<i64: 1>, scalar_prefetch = 0 : i64, scratch_operands = 0 : i64, tpu.core_type = #tpu.core_type<tc>, window_params = [{transform_indices = @transform_0, window_bounds = array<i64: 2, 16, 32>}, {pipeline_mode = #tpu.pipeline_mode<synchronous>, transform_indices = @transform_1, window_bounds = array<i64: 32, 24>}, {pipeline_mode = #tpu.pipeline_mode<synchronous>, transform_indices = @transform_2, window_bounds = array<i64: 1, 24>}, {pipeline_mode = #tpu.pipeline_mode<synchronous>, transform_indices = @transform_3, window_bounds = array<i64: 1, 24>}, {transform_indices = @transform_4, window_bounds = array<i64: 1, 2, 16>}]} {
    %c0 = arith.constant 0 : index
    %c0_0 = arith.constant 0 : index
    %c0_1 = arith.constant 0 : index
    %0 = vector.load %arg1[%c0, %c0_0, %c0_1] : memref<2x16x32xbf16, #tpu.memory_space<vmem>>, vector<2x16x32xbf16>
    %1 = vector.shape_cast %0 : vector<2x16x32xbf16> to vector<32x32xbf16>
    %c0_2 = arith.constant 0 : index
    %c0_3 = arith.constant 0 : index
    %2 = vector.load %arg2[%c0_2, %c0_3] : memref<32x24xbf16, #tpu.memory_space<vmem>>, vector<32x24xbf16>
    %cst = arith.constant dense<0.000000e+00> : vector<32x24xf32>
    %3 = tpu.matmul %1, %2, %cst {dimension_numbers = #tpu.dot_dimension_numbers<[1], [0], [0], [1], [0, 0, 1, 1], [], []>} : vector<32x32xbf16>, vector<32x24xbf16>, vector<32x24xf32> -> vector<32x24xf32>
    %c0_4 = arith.constant 0 : index
    %c0_5 = arith.constant 0 : index
    %4 = vector.load %arg3[%c0_4, %c0_5] : memref<1x24xf32, #tpu.memory_space<vmem>>, vector<1x24xf32>
    %5 = vector.broadcast %4 : vector<1x24xf32> to vector<32x24xf32>
    %6 = arith.addf %3, %5 : vector<32x24xf32>
    %cst_6 = arith.constant 0.000000e+00 : f32
    %7 = vector.broadcast %cst_6 : f32 to vector<32x24xf32>
    %8 = arith.maximumf %6, %7 : vector<32x24xf32>
    %9 = vector.shape_cast %8 : vector<32x24xf32> to vector<2x16x24xf32>
    %c0_7 = arith.constant 0 : index
    %c0_8 = arith.constant 0 : index
    %10 = vector.load %arg4[%c0_7, %c0_8] : memref<1x24xf32, #tpu.memory_space<vmem>>, vector<1x24xf32>
    %11 = vector.shape_cast %10 : vector<1x24xf32> to vector<1x1x24xf32>
    %12 = vector.broadcast %11 : vector<1x1x24xf32> to vector<2x16x24xf32>
    %13 = arith.mulf %9, %12 : vector<2x16x24xf32>
    %cst_9 = arith.constant dense<0.000000e+00> : vector<2x16xf32>
    %14 = vector.multi_reduction <add>, %13, %cst_9 [2] : vector<2x16x24xf32> to vector<2x16xf32>
    %15 = tpu.iota {dimensions = array<i32: 1>} : vector<2x16xi32>
    %c8_i32 = arith.constant 8 : i32
    %16 = vector.broadcast %c8_i32 : i32 to vector<2x16xi32>
    %17 = arith.cmpi slt, %15, %16 : vector<2x16xi32>
    %cst_10 = arith.constant -1.000000e+30 : f32
    %18 = vector.broadcast %cst_10 : f32 to vector<2x16xf32>
    %19 = arith.select %17, %14, %18 : vector<2x16xi1>, vector<2x16xf32>
    %cst_11 = arith.constant dense<0xFF800000> : vector<2xf32>
    %20 = vector.multi_reduction <maximumf>, %19, %cst_11 [1] : vector<2x16xf32> to vector<2xf32>
    %21 = vector.shape_cast %20 : vector<2xf32> to vector<2x1xf32>
    %22 = vector.broadcast %21 : vector<2x1xf32> to vector<2x16xf32>
    %23 = arith.subf %19, %22 : vector<2x16xf32>
    %24 = math.exp %23 : vector<2x16xf32>
    %cst_12 = arith.constant dense<0.000000e+00> : vector<2xf32>
    %25 = vector.multi_reduction <add>, %24, %cst_12 [1] : vector<2x16xf32> to vector<2xf32>
    %26 = vector.shape_cast %25 : vector<2xf32> to vector<2x1xf32>
    %27 = tpu.reciprocal %26 {approx = true} : vector<2x1xf32> -> vector<2x1xf32>
    %28 = vector.broadcast %27 : vector<2x1xf32> to vector<2x16xf32>
    %29 = arith.mulf %24, %28 : vector<2x16xf32>
    %c0_13 = arith.constant 0 : index
    %c0_14 = arith.constant 0 : index
    %c0_15 = arith.constant 0 : index
    %30 = vector.load %arg5[%c0_13, %c0_14, %c0_15] : memref<1x2x16xf32, #tpu.memory_space<vmem>>, vector<1x2x16xf32>
    %31 = vector.shape_cast %30 : vector<1x2x16xf32> to vector<2x16xf32>
    %32 = vector.shape_cast %29 : vector<2x16xf32> to vector<1x2x16xf32>
    tpu.vector_store %arg5[%c0_13, %c0_14, %c0_15], %32 {strides = array<i32>} : memref<1x2x16xf32, #tpu.memory_space<vmem>>, vector<1x2x16xf32>,
    return
  }
  func.func @transform_0(%arg0: i32) -> (i32, i32, i32) {
    %c0_i32 = arith.constant 0 : i32
    %c0_i32_0 = arith.constant 0 : i32
    %c0_i32_1 = arith.constant 0 : i32
    return %arg0, %c0_i32, %c0_i32_0 : i32, i32, i32
  }
  func.func @transform_1(%arg0: i32) -> (i32, i32) {
    %c0_i32 = arith.constant 0 : i32
    %c0_i32_0 = arith.constant 0 : i32
    %c0_i32_1 = arith.constant 0 : i32
    return %c0_i32, %c0_i32_0 : i32, i32
  }
  func.func @transform_2(%arg0: i32) -> (i32, i32) {
    %c0_i32 = arith.constant 0 : i32
    %c0_i32_0 = arith.constant 0 : i32
    %c0_i32_1 = arith.constant 0 : i32
    return %c0_i32, %c0_i32_0 : i32, i32
  }
  func.func @transform_3(%arg0: i32) -> (i32, i32) {
    %c0_i32 = arith.constant 0 : i32
    %c0_i32_0 = arith.constant 0 : i32
    %c0_i32_1 = arith.constant 0 : i32
    return %c0_i32, %c0_i32_0 : i32, i32
  }
  func.func @transform_4(%arg0: i32) -> (i32, i32, i32) {
    %c0_i32 = arith.constant 0 : i32
    %c0_i32_0 = arith.constant 0 : i32
    %c0_i32_1 = arith.constant 0 : i32
    return %arg0, %c0_i32, %c0_i32_0 : i32, i32, i32
  }
}

</mosaic_0001>

<llo_original>
// kernel: tpu_custom_call.1
$region0: #{tpu_custom_call.1}
  #allocation0 [shape = 'u32[]', space=smem, size = 0x4, offset = 0x4, fixed_abs, tag = 'smem constant byte address 0x4 - core index']
  #allocation1 [shape = 'u32[144,128]{1,0:T(1,128)}', space=vmem, size = 0x12000, scoped, tag = 'internal scratch']
  %s0 = inlined_call_operand.vmem [shape: bf16[2,16,32], index: 0, kind: input, shape index: {}]
  %s1 = inlined_call_operand.vmem [shape: bf16[32,24], index: 1, kind: input, shape index: {}]
  %s2 = inlined_call_operand.vmem [shape: f32[1,24], index: 2, kind: input, shape index: {}]
  %s3 = inlined_call_operand.vmem [shape: f32[1,24], index: 3, kind: input, shape index: {}]
  %s4 = inlined_call_operand.hbm [shape: f32[1,2,16], index: 4, kind: output, shape index: {}]
  %s5 = sld [smem:[#allocation0]]
  $region26: #{tpu_custom_call.1} parent=0
    _
  %s7 = ssub.s32 1, %s5
  %s8 = scalar_select 0, %s7, %s5
  $region1: #{tpu_custom_call.1} parent=0
    #allocation2 [shape = 'u8[1024]{0}', space=vmem, size = 0x400, scoped, tag = 'output window, operand 0, single buffered']
    #allocation3 [shape = 's32[1]{0}', space=sflag, size = 0x4, scoped, tag = 'scoped memory for tpu_custom_call.1']
    %9 = vsyncpa [#allocation3], 0
    // Predicated region
    $region2: #{tpu_custom_call.1} parent=1 // pred_check
      _
    $region3: #{tpu_custom_call.1} parent=1 // pred_check_branch
      %11 = sbr.rel (0) target = $region5
    $region4: #{tpu_custom_call.1} parent=1 // pred_region
      _
    $region5: #{tpu_custom_call.1} parent=1 // pred_fallthru
      _
    // Predicated region
    $region6: #{tpu_custom_call.1} parent=1 // pred_check
      _
    $region7: #{tpu_custom_call.1} parent=1 // pred_check_branch
      %13 = sbr.rel (0) target = $region9
    $region8: #{tpu_custom_call.1} parent=1 // pred_region
      _
    $region9: #{tpu_custom_call.1} parent=1 // pred_fallthru
      _
    // Predicated region
    $region10: #{tpu_custom_call.1} parent=1 // pred_check
      _
    $region11: #{tpu_custom_call.1} parent=1 // pred_check_branch
      %15 = sbr.rel (0) target = $region13
    $region12: #{tpu_custom_call.1} parent=1 // pred_region
      _
    $region13: #{tpu_custom_call.1} parent=1 // pred_fallthru
      _
    // Predicated region
    $region14: #{tpu_custom_call.1} parent=1 // pred_check
      _
    $region15: #{tpu_custom_call.1} parent=1 // pred_check_branch
      %17 = sbr.rel (0) target = $region17
    $region16: #{tpu_custom_call.1} parent=1 // pred_region
      _
    $region17: #{tpu_custom_call.1} parent=1 // pred_fallthru
      _
    %v19 = vld [vmem:[%s0] sm:$0xf]
    %v20 = vld [vmem:[%s0 + $0x4] sm:$0xf]
    %v21 = vld [vmem:[%s0 + $0x8] sm:$0xf]
    %v22 = vld [vmem:[%s0 + $0xc] sm:$0xf]
    %v23 = vld [vmem:[%s1] sm:$0xf]
    %v24 = vld [vmem:[%s1 + $0x4] sm:$0xf]
    %v25 = vld [vmem:[%s1 + $0x8] sm:$0xf]
    %v26 = vld [vmem:[%s1 + $0xc] sm:$0xf]
    %v27 = vld [vmem:[%s2] sm:$0x1]
    %v29 = vlaneseq
    %v30 = vshrl.u32 %v29, 7
    %v31 = vsub.s32 0, %v30
    %v32 = vrot.slane %v27, %v31
    %v38 = vunpack.c.l.b16 %v19
    %v39 = vunpack.c.l.b16 %v20
    %v40 = vunpack.c.l.b16 %v21
    %v41 = vunpack.c.l.b16 %v22
    %v42 = vpack.c.b16 %v39, %v38
    %v43 = vpack.c.b16 %v41, %v40
    %v48 = vunpack.c.l.b16 %v23
    %v49 = vunpack.c.l.b16 %v24
    %v50 = vunpack.c.l.b16 %v25
    %v51 = vunpack.c.l.b16 %v26
    %v52 = vpack.c.b16 %v49, %v48
    %v53 = vpack.c.b16 %v51, %v50
    %vm56 = vcmask 261120
    %v58 = vsel %vm56, %v42, 0
    %v61 = vsel %vm56, %v43, 0
    %63 = vmatprep.subr.bf16.mxu0 0
    %64 = vmatpush1.bf16.msra.mxu0 %v52
    %65 = vmatprep.subr.bf16.mxu0 0
    %66 = vmatpush1.bf16.msra.mxu0 %v53
    %67 = vmatprep.subr.bf16.mxu0 0
    %68 = vmatpush1.bf16.msra.mxu0 0
    %69 = vmatprep.subr.bf16.mxu0 0
    %70 = vmatpush1.bf16.msra.mxu0 0
    %71 = vmatprep.subr.bf16.mxu0 0
    %72 = vmatpush1.bf16.msra.mxu0 0
    %73 = vmatprep.subr.bf16.mxu0 0
    %74 = vmatpush1.bf16.msra.mxu0 0
    %75 = vmatprep.subr.bf16.mxu0 0
    %76 = vmatpush1.bf16.msra.mxu0 0
    %77 = vmatprep.subr.bf16.mxu0 0
    %78 = vmatpush1.bf16.msra.mxu0 0
    %79 = vmatprep.subr.bf16.mxu0 0
    %80 = vmatpush1.bf16.msra.mxu0 0
    %81 = vmatprep.subr.bf16.mxu0 0
    %82 = vmatpush1.bf16.msra.mxu0 0
    %83 = vmatprep.subr.bf16.mxu0 0
    %84 = vmatpush1.bf16.msra.mxu0 0
    %85 = vmatprep.subr.bf16.mxu0 0
    %86 = vmatpush1.bf16.msra.mxu0 0
    %87 = vmatprep.subr.bf16.mxu0 0
    %88 = vmatpush1.bf16.msra.mxu0 0
    %89 = vmatprep.subr.bf16.mxu0 0
    %90 = vmatpush1.bf16.msra.mxu0 0
    %91 = vmatprep.subr.bf16.mxu0 0
    %92 = vmatpush1.bf16.msra.mxu0 0
    %93 = vmatprep.subr.bf16.mxu0 0
    %94 = vmatpush1.bf16.msra.mxu0 0
    %95 = vmatprep.mubr.bf16.mxu0 0
    %96 = vmatmul.mubr.bf16.gmra.mrb[0].mxu0 %v58
    %v97 = vpop.f32.mrb[0].mxu0
    %v98 = vadd.f32 %v32, %v97
    %v99 = vpop.f32.mrb[0].mxu0
    %v100 = vpop.f32.mrb[0].mxu0
    %v101 = vadd.f32 %v32, %v100
    %v102 = vpop.f32.mrb[0].mxu0
    %103 = vmatprep.mubr.bf16.mxu0 0
    %104 = vmatmul.mubr.bf16.gmra.mrb[0].mxu0 %v61
    %v105 = vpop.f32.mrb[0].mxu0
    %v106 = vadd.f32 %v32, %v105
    %v107 = vpop.f32.mrb[0].mxu0
    %v108 = vpop.f32.mrb[0].mxu0
    %v109 = vadd.f32 %v32, %v108
    %v110 = vpop.f32.mrb[0].mxu0
    %111 = vdwg.mxu0
    %v112 = vmax.f32 %v98, 0.0
    %v113 = vmax.f32 %v101, 0.0
    %v114 = vmax.f32 %v106, 0.0
    %v115 = vmax.f32 %v109, 0.0
    %v116 = vld [vmem:[%s3] sm:$0x1]
    %v118 = vlaneseq
    %v119 = vshrl.u32 %v118, 7
    %v120 = vsub.s32 0, %v119
    %v121 = vrot.slane %v116, %v120
    %v123 = vmul.f32 %v112, %v121
    %v124 = vmul.f32 %v113, %v121
    %v125 = vmul.f32 %v114, %v121
    %v126 = vmul.f32 %v115, %v121
    %vm127 = vcmask 195584
    %v128 = vsel %vm127, %v123, 0.0
    %129 = vadd.xlane.f32.xlu0 %v128
    %v130 = vpop.xlane.xlu0 %129
    %v131 = vsel %vm127, %v124, 0.0
    %132 = vadd.xlane.f32.xlu0 %v131
    %v133 = vpop.xlane.xlu0 %132
    %v134 = vsel %vm127, %v125, 0.0
    %135 = vadd.xlane.f32.xlu0 %v134
    %v136 = vpop.xlane.xlu0 %135
    %v137 = vsel %vm127, %v126, 0.0
    %138 = vadd.xlane.f32.xlu0 %v137
    %v139 = vpop.xlane.xlu0 %138
    %v140 = vlaneseq
    %v141 = vand.u32 %v140, 127
    %vm142 = vcmp.lt.s32.totalorder %v141, 8
    %v147 = vlaneseq
    %v148 = vshrl.u32 %v147, 7
    %v149 = vsub.s32 %v141, %v148
    %v150 = vrot.slane %v130, %v149
    %v151 = vadd.s32 %v141, 4294967288
    %v152 = vlaneseq
    %v153 = vshrl.u32 %v152, 7
    %v154 = vsub.s32 %v151, %v153
    %v155 = vrot.slane %v133, %v154
    %vm156 = vcmask 130112
    %v157 = vsel %vm156, %v155, %v150
    %v158 = vlaneseq
    %v159 = vshrl.u32 %v158, 7
    %v160 = vsub.s32 %v141, %v159
    %v161 = vrot.slane %v136, %v160
    %v162 = vlaneseq
    %v163 = vshrl.u32 %v162, 7
    %v164 = vsub.s32 %v151, %v163
    %v165 = vrot.slane %v139, %v164
    %v166 = vsel %vm156, %v165, %v161
    %vm167 = vcmask 1041409
    %v168 = vsel %vm167, %v166, %v157
    %v170 = vsel %vm142, %v168, -1e+30
    %vm171 = vcmask 123904
    %v172 = vsel %vm171, %v170, -inf
    %173 = vmax.xlane.f32.xlu0 %v172
    %v174 = vpop.xlane.xlu0 %173
    %v175 = vsub.f32 %v170, %v174
    %v176 = vmul.f32 %v175, 1.442695
    %v177 = vpow.pop %v176
    %v178 = vsel %vm171, %v177, 0.0
    %179 = vadd.xlane.f32.xlu0 %v178
    %v180 = vpop.xlane.xlu0 %179
    %v181 = vrcp.pop %v180
    %v182 = vmul.f32 %v177, %v181
    %183 = vst.msk [vmem:[#allocation2] sm:$0x3] %vm171, %v182
    // Predicated region
    $region18: #{tpu_custom_call.1} parent=1 // pred_check
      _
    $region19: #{tpu_custom_call.1} parent=1 // pred_check_branch
      %185 = sbr.rel (0) target = $region21
    $region20: #{tpu_custom_call.1} parent=1 // pred_region
      %s187 = ssub.s32 32, 32
      %188 = vsyncadd [#allocation3], %s187
      %s190 = sshll.u32 [#allocation2], 4
      %s191 = int_to_ptr.vmem [resolvable:$true] %s190
      %193 = dma.vmem_to_hbm [thread:$0]  %s191, 32, %s4, [#allocation3]
    $region21: #{tpu_custom_call.1} parent=1 // pred_fallthru
      _
    // Predicated region
    $region22: #{tpu_custom_call.1} parent=1 // pred_check
      _
    $region23: #{tpu_custom_call.1} parent=1 // pred_check_branch
      %195 = sbr.rel (0) target = $region25
    $region24: #{tpu_custom_call.1} parent=1 // pred_region
      %196 = dma.done [#allocation3], 32
    $region25: #{tpu_custom_call.1} parent=1 // pred_fallthru
      _
    %197 = vsyncpa [#allocation3], 1

</llo_original>
